<compile_context>
chip_gen: v6e
topology: v6e:2x2x1
jax: 0.10.0
libtpu: 0.0.40
codegen_flags: <defaults>
</compile_context>

<pallas_src>
import functools

import jax
import jax.numpy as jnp
import numpy as np
from jax import lax
from jax.experimental import pallas as pl
from jax.experimental.pallas import tpu as pltpu


def _round_up(x, m):
    return (x + m - 1) // m * m


def _num_parallel_tcs():
    """2 on v7x (two TensorCores/chip sharded via 'parallel'); 1 elsewhere."""
    try:
        kind = jax.devices()[0].device_kind.lower()
        if "v7" in kind:
            return 2
    except Exception:
        pass
    return 1


def adaptive_resnet_kernel(x_ref, w1_ref, b1_ref, w2_ref, b2_ref,
                           w3_ref, b3_ref, dt_ref, o_ref, *,
                           num_layers, full_unroll, matmul_dtype):
    x = x_ref[...].astype(jnp.float32)   # (state_dim, TILE_B): batch on lanes
    tile_b = x.shape[1]
    w1 = w1_ref[...]                     # (hidden, state)   (f32 or bf16)
    w2 = w2_ref[...]                     # (hidden, hidden)
    w3 = w3_ref[...]                     # (state, hidden)

    # Hoisted bias broadcasts: 3 total, not 3*num_layers (JAX does not CSE
    # broadcast_in_dim, so leaving them in the loop costs lane broadcasts on
    # the serial critical path).
    b1b = jnp.broadcast_to(b1_ref[...], (w1.shape[0], tile_b))
    b2b = jnp.broadcast_to(b2_ref[...], (w2.shape[0], tile_b))
    b3b = jnp.broadcast_to(b3_ref[...], (w3.shape[0], tile_b))

    def euler_step(i, x):
        # Scalar step size straight from SMEM (exp already done in wrapper).
        dt = dt_ref[0, i]
        # Dots take matmul_dtype operands; accumulation and all elementwise
        # math (tanh, x + dt*dx) stay f32 (v5e VPU/EUP have no bf16 path).
        h = jnp.tanh(jnp.dot(w1, x.astype(matmul_dtype),
                             preferred_element_type=jnp.float32) + b1b)
        h = jnp.tanh(jnp.dot(w2, h.astype(matmul_dtype),
                             preferred_element_type=jnp.float32) + b2b)
        dx = jnp.dot(w3, h.astype(matmul_dtype),
                     preferred_element_type=jnp.float32) + b3b
        return x + dt * dx

    # TODO(synk): for very deep nets, explicit MXU driving
    # (pltpu.matmul_push_rhs / matmul_acc_lhs) could keep the three weights
    # stationary across all layers instead of re-pushing them per jnp.dot.
    if full_unroll:
        # Small depth + small live state: full unroll for LLO visibility.
        for i in range(num_layers):
            x = euler_step(i, x)
    else:
        # Deep nets / big tiles: bound vreg live ranges, keep partial unroll.
        x = lax.fori_loop(0, num_layers, euler_step, x, unroll=2)

    o_ref[...] = x.astype(o_ref.dtype)   # lane-dense store


def adaptive_resnet_forward(x, w1, b1, w2, b2, w3, b3, log_dt, *,
                            tile_b=None, use_bf16_matmul=False):
    """x: (B, state_dim); weights in torch (out, in) layout; biases (out,);
    log_dt: (num_layers,). Returns (B, state_dim) in float32."""
    x = x.astype(jnp.float32)
    B, state_dim = x.shape
    hidden_dim = w1.shape[0]
    num_layers = int(log_dt.shape[0])

    # ---- batch tile selection ------------------------------------------
    # Lane-dense tile: multiple of 256 (MXU width on v6e/v7x, also multiple
    # of v5e's 128).  Cap raised to 2048: x/out tiles are only
    # state_dim*tile_b*4 bytes, so VMEM is nowhere near binding, while a
    # larger N per dot amortizes per-dot fixed cost and the ~0.35us/step
    # grid overhead.
    padded_b_min = _round_up(max(B, 1), 256)
    if tile_b is None:
        tile_b = min(2048, padded_b_min)
        # v7x megacore: make the 'parallel' batch axis yield >=2 grid steps
        # (>=256 lanes per core) so the second TensorCore is not idle.
        n_tc = _num_parallel_tcs()
        if n_tc >= 2 and padded_b_min // tile_b < n_tc and padded_b_min >= 512:
            tile_b = max(256, _round_up(padded_b_min // n_tc, 256))
    padded_b = _round_up(B, tile_b)
    grid = (padded_b // tile_b,)

    # ---- operand prep ----------------------------------------------------
    matmul_dtype = jnp.bfloat16 if use_bf16_matmul else jnp.float32
    w1k = w1.astype(matmul_dtype)
    w2k = w2.astype(matmul_dtype)
    w3k = w3.astype(matmul_dtype)
    # Biases stay f32 (added post-accumulation).
    b1c = b1.astype(jnp.float32).reshape(hidden_dim, 1)
    b2c = b2.astype(jnp.float32).reshape(hidden_dim, 1)
    b3c = b3.astype(jnp.float32).reshape(state_dim, 1)
    # Precompute dt = exp(log_dt) on the host side of the kernel: removes a
    # scalar splat + EUP exp from every layer of the serial chain.
    dt2 = jnp.exp(log_dt.astype(jnp.float32)).reshape(1, num_layers)

    # Transpose once: batch onto lanes; pad batch to the tile.
    xt = jnp.zeros((state_dim, padded_b), jnp.float32).at[:, :B].set(x.T)

    # ---- unroll / VMEM budgeting ----------------------------------------
    # Full unroll only while the live hidden activation stays well under half
    # the vreg file (spills eat vld/vst slots, worst on v5e's single vst).
    full_unroll = (num_layers <= 8) and (hidden_dim * tile_b * 4 <= (96 << 10))

    w_item = jnp.dtype(matmul_dtype).itemsize
    weight_bytes = (hidden_dim * state_dim + hidden_dim * hidden_dim
                    + state_dim * hidden_dim) * w_item
    bias_bytes = (2 * hidden_dim + state_dim) * 4
    tile_bytes = 2 * 2 * state_dim * tile_b * 4        # x + out, double-buffered
    vmem_need = 2 * (weight_bytes + bias_bytes) + tile_bytes
    # Explicit limit so large hidden_dim doesn't trip the 16/32 MiB scoped
    # defaults; keep under ~48 MiB so it also fits v7x's 64 MiB physical VMEM.
    vmem_limit = int(min(48 << 20, max(32 << 20, 2 * vmem_need)))

    kernel = functools.partial(adaptive_resnet_kernel,
                               num_layers=num_layers,
                               full_unroll=full_unroll,
                               matmul_dtype=matmul_dtype)

    def const_spec(shape):
        # Same block every grid step -> weights/biases stay resident in VMEM.
        return pl.BlockSpec(shape, lambda i: (0, 0))

    flops = 2 * num_layers * padded_b * (2 * state_dim * hidden_dim
                                         + hidden_dim * hidden_dim)
    transcendentals = num_layers * 2 * hidden_dim * padded_b
    bytes_accessed = (4 * 2 * state_dim * padded_b + weight_bytes + bias_bytes
                      + 4 * num_layers)

    out = pl.pallas_call(
        kernel,
        out_shape=jax.ShapeDtypeStruct((state_dim, padded_b), jnp.float32),
        grid=grid,
        in_specs=[
            pl.BlockSpec((state_dim, tile_b), lambda i: (0, i)),   # x tile
            const_spec((hidden_dim, state_dim)),                   # w1
            const_spec((hidden_dim, 1)),                           # b1
            const_spec((hidden_dim, hidden_dim)),                  # w2
            const_spec((hidden_dim, 1)),                           # b2
            const_spec((state_dim, hidden_dim)),                   # w3
            const_spec((state_dim, 1)),                            # b3
            pl.BlockSpec(memory_space=pltpu.MemorySpace.SMEM),     # dt
        ],
        out_specs=pl.BlockSpec((state_dim, tile_b), lambda i: (0, i)),
        compiler_params=pltpu.CompilerParams(
            dimension_semantics=("parallel",),
            vmem_limit_bytes=vmem_limit),
        cost_estimate=pl.CostEstimate(flops=flops,
                                      transcendentals=transcendentals,
                                      bytes_accessed=bytes_accessed),
    )(xt, w1k, b1c, w2k, b2c, w3k, b3c, dt2)

    # Drop batch padding, transpose back to (B, state_dim).
    return out[:, :B].T


def init_params(key, state_dim, hidden_dim, num_layers, init_dt):
    """torch.nn.Linear-style init: W is (out, in), b is (out,), both
    uniform(+/- 1/sqrt(fan_in)); log_dt = log(init_dt) per layer."""
    ks = jax.random.split(key, 6)

    def linear(kw, kb, fan_in, fan_out):
        bound = 1.0 / np.sqrt(fan_in)
        w = jax.random.uniform(kw, (fan_out, fan_in), jnp.float32, -bound, bound)
        b = jax.random.uniform(kb, (fan_out,), jnp.float32, -bound, bound)
        return w, b

    w1, b1 = linear(ks[0], ks[1], state_dim, hidden_dim)
    w2, b2 = linear(ks[2], ks[3], hidden_dim, hidden_dim)
    w3, b3 = linear(ks[4], ks[5], hidden_dim, state_dim)
    log_dt = jnp.full((num_layers,), np.log(init_dt), dtype=jnp.float32)
    return w1, b1, w2, b2, w3, b3, log_dt


def reference_forward(x, w1, b1, w2, b2, w3, b3, log_dt, num_layers):
    """Pure-JAX reference of the PyTorch forward pass (x @ W.T + b)."""
    for i in range(num_layers):
        dt = jnp.exp(log_dt[i])
        h = jnp.tanh(x @ w1.T + b1)
        h = jnp.tanh(h @ w2.T + b2)
        dx = h @ w3.T + b3
        x = x + dt * dx
    return x


if __name__ == "__main__":
    BATCH = 2
    STATE_DIM = 8
    HIDDEN_DIM = 32
    NUM_LAYERS = 4
    INIT_DT = 0.1

    key = jax.random.PRNGKey(0)
    kx, kp = jax.random.split(key)
    x0 = jax.random.normal(kx, (BATCH, STATE_DIM), dtype=jnp.float32)
    params = init_params(kp, STATE_DIM, HIDDEN_DIM, NUM_LAYERS, INIT_DT)

    ref = reference_forward(x0, *params, num_layers=NUM_LAYERS)

    # f32 path: exact semantics of the PyTorch module.
    out = adaptive_resnet_forward(x0, *params, use_bf16_matmul=False)
    out = jax.block_until_ready(out)
    np.testing.assert_allclose(np.asarray(out), np.asarray(ref),
                               rtol=1e-5, atol=1e-5)

    # bf16-matmul path (v6e/v7x MXU rate): f32 accumulate, loose tolerance.
    out_bf16 = adaptive_resnet_forward(x0, *params, use_bf16_matmul=True)
    out_bf16 = jax.block_until_ready(out_bf16)
    np.testing.assert_allclose(np.asarray(out_bf16), np.asarray(ref),
                               rtol=3e-2, atol=3e-2)

    print("KERNEL_OK")
</pallas_src>

<mosaic_0001>
module attributes {stable_mosaic.version = 11 : i64} {
  func.func @adaptive_resnet_kernel(%arg0: i32, %arg1: memref<8x256xf32, #tpu.memory_space<vmem>>, %arg2: memref<32x8xf32, #tpu.memory_space<vmem>>, %arg3: memref<32x1xf32, #tpu.memory_space<vmem>>, %arg4: memref<32x32xf32, #tpu.memory_space<vmem>>, %arg5: memref<32x1xf32, #tpu.memory_space<vmem>>, %arg6: memref<8x32xf32, #tpu.memory_space<vmem>>, %arg7: memref<8x1xf32, #tpu.memory_space<vmem>>, %arg8: memref<1x4xf32, #tpu.memory_space<smem>>, %arg9: memref<8x256xf32, #tpu.memory_space<vmem>>) attributes {dimension_semantics = [#tpu.dimension_semantics<parallel>], iteration_bounds = array<i64: 1>, scalar_prefetch = 0 : i64, scratch_operands = 0 : i64, tpu.core_type = #tpu.core_type<tc>, window_params = [{transform_indices = @transform_0, window_bounds = array<i64: 8, 256>}, {pipeline_mode = #tpu.pipeline_mode<synchronous>, transform_indices = @transform_1, window_bounds = array<i64: 32, 8>}, {pipeline_mode = #tpu.pipeline_mode<synchronous>, transform_indices = @transform_2, window_bounds = array<i64: 32, 1>}, {pipeline_mode = #tpu.pipeline_mode<synchronous>, transform_indices = @transform_3, window_bounds = array<i64: 32, 32>}, {pipeline_mode = #tpu.pipeline_mode<synchronous>, transform_indices = @transform_4, window_bounds = array<i64: 32, 1>}, {pipeline_mode = #tpu.pipeline_mode<synchronous>, transform_indices = @transform_5, window_bounds = array<i64: 8, 32>}, {pipeline_mode = #tpu.pipeline_mode<synchronous>, transform_indices = @transform_6, window_bounds = array<i64: 8, 1>}, {transform_indices = @transform_7, window_bounds = array<i64: 1, 4>}, {transform_indices = @transform_8, window_bounds = array<i64: 8, 256>}]} {
    %c0 = arith.constant 0 : index
    %c0_0 = arith.constant 0 : index
    %0 = vector.load %arg1[%c0, %c0_0] : memref<8x256xf32, #tpu.memory_space<vmem>>, vector<8x256xf32>
    %c0_1 = arith.constant 0 : index
    %c0_2 = arith.constant 0 : index
    %1 = vector.load %arg2[%c0_1, %c0_2] : memref<32x8xf32, #tpu.memory_space<vmem>>, vector<32x8xf32>
    %c0_3 = arith.constant 0 : index
    %c0_4 = arith.constant 0 : index
    %2 = vector.load %arg4[%c0_3, %c0_4] : memref<32x32xf32, #tpu.memory_space<vmem>>, vector<32x32xf32>
    %c0_5 = arith.constant 0 : index
    %c0_6 = arith.constant 0 : index
    %3 = vector.load %arg6[%c0_5, %c0_6] : memref<8x32xf32, #tpu.memory_space<vmem>>, vector<8x32xf32>
    %c0_7 = arith.constant 0 : index
    %c0_8 = arith.constant 0 : index
    %4 = vector.load %arg3[%c0_7, %c0_8] : memref<32x1xf32, #tpu.memory_space<vmem>>, vector<32x1xf32>
    %5 = vector.shape_cast %4 : vector<32x1xf32> to vector<32x1xf32>
    %6 = vector.broadcast %5 : vector<32x1xf32> to vector<32x256xf32>
    %c0_9 = arith.constant 0 : index
    %c0_10 = arith.constant 0 : index
    %7 = vector.load %arg5[%c0_9, %c0_10] : memref<32x1xf32, #tpu.memory_space<vmem>>, vector<32x1xf32>
    %8 = vector.shape_cast %7 : vector<32x1xf32> to vector<32x1xf32>
    %9 = vector.broadcast %8 : vector<32x1xf32> to vector<32x256xf32>
    %c0_11 = arith.constant 0 : index
    %c0_12 = arith.constant 0 : index
    %10 = vector.load %arg7[%c0_11, %c0_12] : memref<8x1xf32, #tpu.memory_space<vmem>>, vector<8x1xf32>
    %11 = vector.shape_cast %10 : vector<8x1xf32> to vector<8x1xf32>
    %12 = vector.broadcast %11 : vector<8x1xf32> to vector<8x256xf32>
    %c0_13 = arith.constant 0 : index
    %c0_14 = arith.constant 0 : index
    %13 = memref.load %arg8[%c0_13, %c0_14] : memref<1x4xf32, #tpu.memory_space<smem>>
    %cst = arith.constant dense<0.000000e+00> : vector<32x256xf32>
    %14 = tpu.matmul %1, %0, %cst {dimension_numbers = #tpu.dot_dimension_numbers<[1], [0], [0], [1], [0, 0, 1, 1], [], []>} : vector<32x8xf32>, vector<8x256xf32>, vector<32x256xf32> -> vector<32x256xf32>
    %15 = arith.addf %14, %6 : vector<32x256xf32>
    %16 = math.tanh %15 : vector<32x256xf32>
    %cst_15 = arith.constant dense<0.000000e+00> : vector<32x256xf32>
    %17 = tpu.matmul %2, %16, %cst_15 {dimension_numbers = #tpu.dot_dimension_numbers<[1], [0], [0], [1], [0, 0, 1, 1], [], []>} : vector<32x32xf32>, vector<32x256xf32>, vector<32x256xf32> -> vector<32x256xf32>
    %18 = arith.addf %17, %9 : vector<32x256xf32>
    %19 = math.tanh %18 : vector<32x256xf32>
    %cst_16 = arith.constant dense<0.000000e+00> : vector<8x256xf32>
    %20 = tpu.matmul %3, %19, %cst_16 {dimension_numbers = #tpu.dot_dimension_numbers<[1], [0], [0], [1], [0, 0, 1, 1], [], []>} : vector<8x32xf32>, vector<32x256xf32>, vector<8x256xf32> -> vector<8x256xf32>
    %21 = arith.addf %20, %12 : vector<8x256xf32>
    %22 = vector.broadcast %13 : f32 to vector<8x256xf32>
    %23 = arith.mulf %22, %21 : vector<8x256xf32>
    %24 = arith.addf %0, %23 : vector<8x256xf32>
    %c0_17 = arith.constant 0 : index
    %c1 = arith.constant 1 : index
    %25 = memref.load %arg8[%c0_17, %c1] : memref<1x4xf32, #tpu.memory_space<smem>>
    %cst_18 = arith.constant dense<0.000000e+00> : vector<32x256xf32>
    %26 = tpu.matmul %1, %24, %cst_18 {dimension_numbers = #tpu.dot_dimension_numbers<[1], [0], [0], [1], [0, 0, 1, 1], [], []>} : vector<32x8xf32>, vector<8x256xf32>, vector<32x256xf32> -> vector<32x256xf32>
    %27 = arith.addf %26, %6 : vector<32x256xf32>
    %28 = math.tanh %27 : vector<32x256xf32>
    %cst_19 = arith.constant dense<0.000000e+00> : vector<32x256xf32>
    %29 = tpu.matmul %2, %28, %cst_19 {dimension_numbers = #tpu.dot_dimension_numbers<[1], [0], [0], [1], [0, 0, 1, 1], [], []>} : vector<32x32xf32>, vector<32x256xf32>, vector<32x256xf32> -> vector<32x256xf32>
    %30 = arith.addf %29, %9 : vector<32x256xf32>
    %31 = math.tanh %30 : vector<32x256xf32>
    %cst_20 = arith.constant dense<0.000000e+00> : vector<8x256xf32>
    %32 = tpu.matmul %3, %31, %cst_20 {dimension_numbers = #tpu.dot_dimension_numbers<[1], [0], [0], [1], [0, 0, 1, 1], [], []>} : vector<8x32xf32>, vector<32x256xf32>, vector<8x256xf32> -> vector<8x256xf32>
    %33 = arith.addf %32, %12 : vector<8x256xf32>
    %34 = vector.broadcast %25 : f32 to vector<8x256xf32>
    %35 = arith.mulf %34, %33 : vector<8x256xf32>
    %36 = arith.addf %24, %35 : vector<8x256xf32>
    %c0_21 = arith.constant 0 : index
    %c2 = arith.constant 2 : index
    %37 = memref.load %arg8[%c0_21, %c2] : memref<1x4xf32, #tpu.memory_space<smem>>
    %cst_22 = arith.constant dense<0.000000e+00> : vector<32x256xf32>
    %38 = tpu.matmul %1, %36, %cst_22 {dimension_numbers = #tpu.dot_dimension_numbers<[1], [0], [0], [1], [0, 0, 1, 1], [], []>} : vector<32x8xf32>, vector<8x256xf32>, vector<32x256xf32> -> vector<32x256xf32>
    %39 = arith.addf %38, %6 : vector<32x256xf32>
    %40 = math.tanh %39 : vector<32x256xf32>
    %cst_23 = arith.constant dense<0.000000e+00> : vector<32x256xf32>
    %41 = tpu.matmul %2, %40, %cst_23 {dimension_numbers = #tpu.dot_dimension_numbers<[1], [0], [0], [1], [0, 0, 1, 1], [], []>} : vector<32x32xf32>, vector<32x256xf32>, vector<32x256xf32> -> vector<32x256xf32>
    %42 = arith.addf %41, %9 : vector<32x256xf32>
    %43 = math.tanh %42 : vector<32x256xf32>
    %cst_24 = arith.constant dense<0.000000e+00> : vector<8x256xf32>
    %44 = tpu.matmul %3, %43, %cst_24 {dimension_numbers = #tpu.dot_dimension_numbers<[1], [0], [0], [1], [0, 0, 1, 1], [], []>} : vector<8x32xf32>, vector<32x256xf32>, vector<8x256xf32> -> vector<8x256xf32>
    %45 = arith.addf %44, %12 : vector<8x256xf32>
    %46 = vector.broadcast %37 : f32 to vector<8x256xf32>
    %47 = arith.mulf %46, %45 : vector<8x256xf32>
    %48 = arith.addf %36, %47 : vector<8x256xf32>
    %c0_25 = arith.constant 0 : index
    %c3 = arith.constant 3 : index
    %49 = memref.load %arg8[%c0_25, %c3] : memref<1x4xf32, #tpu.memory_space<smem>>
    %cst_26 = arith.constant dense<0.000000e+00> : vector<32x256xf32>
    %50 = tpu.matmul %1, %48, %cst_26 {dimension_numbers = #tpu.dot_dimension_numbers<[1], [0], [0], [1], [0, 0, 1, 1], [], []>} : vector<32x8xf32>, vector<8x256xf32>, vector<32x256xf32> -> vector<32x256xf32>
    %51 = arith.addf %50, %6 : vector<32x256xf32>
    %52 = math.tanh %51 : vector<32x256xf32>
    %cst_27 = arith.constant dense<0.000000e+00> : vector<32x256xf32>
    %53 = tpu.matmul %2, %52, %cst_27 {dimension_numbers = #tpu.dot_dimension_numbers<[1], [0], [0], [1], [0, 0, 1, 1], [], []>} : vector<32x32xf32>, vector<32x256xf32>, vector<32x256xf32> -> vector<32x256xf32>
    %54 = arith.addf %53, %9 : vector<32x256xf32>
    %55 = math.tanh %54 : vector<32x256xf32>
    %cst_28 = arith.constant dense<0.000000e+00> : vector<8x256xf32>
    %56 = tpu.matmul %3, %55, %cst_28 {dimension_numbers = #tpu.dot_dimension_numbers<[1], [0], [0], [1], [0, 0, 1, 1], [], []>} : vector<8x32xf32>, vector<32x256xf32>, vector<8x256xf32> -> vector<8x256xf32>
    %57 = arith.addf %56, %12 : vector<8x256xf32>
    %58 = vector.broadcast %49 : f32 to vector<8x256xf32>
    %59 = arith.mulf %58, %57 : vector<8x256xf32>
    %60 = arith.addf %48, %59 : vector<8x256xf32>
    %c0_29 = arith.constant 0 : index
    %c0_30 = arith.constant 0 : index
    %61 = vector.load %arg9[%c0_29, %c0_30] : memref<8x256xf32, #tpu.memory_space<vmem>>, vector<8x256xf32>
    tpu.vector_store %arg9[%c0_29, %c0_30], %60 {strides = array<i32>} : memref<8x256xf32, #tpu.memory_space<vmem>>, vector<8x256xf32>,
    return
  }
  func.func @transform_0(%arg0: i32) -> (i32, i32) {
    %c0_i32 = arith.constant 0 : i32
    %c0_i32_0 = arith.constant 0 : i32
    return %c0_i32, %arg0 : i32, i32
  }
  func.func @transform_1(%arg0: i32) -> (i32, i32) {
    %c0_i32 = arith.constant 0 : i32
    %c0_i32_0 = arith.constant 0 : i32
    %c0_i32_1 = arith.constant 0 : i32
    return %c0_i32, %c0_i32_0 : i32, i32
  }
  func.func @transform_2(%arg0: i32) -> (i32, i32) {
    %c0_i32 = arith.constant 0 : i32
    %c0_i32_0 = arith.constant 0 : i32
    %c0_i32_1 = arith.constant 0 : i32
    return %c0_i32, %c0_i32_0 : i32, i32
  }
  func.func @transform_3(%arg0: i32) -> (i32, i32) {
    %c0_i32 = arith.constant 0 : i32
    %c0_i32_0 = arith.constant 0 : i32
    %c0_i32_1 = arith.constant 0 : i32
    return %c0_i32, %c0_i32_0 : i32, i32
  }
  func.func @transform_4(%arg0: i32) -> (i32, i32) {
    %c0_i32 = arith.constant 0 : i32
    %c0_i32_0 = arith.constant 0 : i32
    %c0_i32_1 = arith.constant 0 : i32
    return %c0_i32, %c0_i32_0 : i32, i32
  }
  func.func @transform_5(%arg0: i32) -> (i32, i32) {
    %c0_i32 = arith.constant 0 : i32
    %c0_i32_0 = arith.constant 0 : i32
    %c0_i32_1 = arith.constant 0 : i32
    return %c0_i32, %c0_i32_0 : i32, i32
  }
  func.func @transform_6(%arg0: i32) -> (i32, i32) {
    %c0_i32 = arith.constant 0 : i32
    %c0_i32_0 = arith.constant 0 : i32
    %c0_i32_1 = arith.constant 0 : i32
    return %c0_i32, %c0_i32_0 : i32, i32
  }
  func.func @transform_7(%arg0: i32) -> (i32, i32) {
    %c0_i32 = arith.constant 0 : i32
    %c0_i32_0 = arith.constant 0 : i32
    %c0_i32_1 = arith.constant 0 : i32
    return %c0_i32, %c0_i32_0 : i32, i32
  }
  func.func @transform_8(%arg0: i32) -> (i32, i32) {
    %c0_i32 = arith.constant 0 : i32
    %c0_i32_0 = arith.constant 0 : i32
    return %c0_i32, %arg0 : i32, i32
  }
}

</mosaic_0001>

<llo_original>
// kernel: tpu_custom_call.1
$region0: #{tpu_custom_call.1}
  #allocation0 [shape = 'u32[]', space=smem, size = 0x4, offset = 0x4, fixed_abs, tag = 'smem constant byte address 0x4 - core index']
  #allocation1 [shape = 'u32[144,128]{1,0:T(1,128)}', space=vmem, size = 0x12000, scoped, tag = 'internal scratch']
  %s0 = inlined_call_operand.vmem [shape: f32[8,256], index: 0, kind: input, shape index: {}]
  %s1 = inlined_call_operand.vmem [shape: f32[32,8], index: 1, kind: input, shape index: {}]
  %s2 = inlined_call_operand.vmem [shape: f32[32,1], index: 2, kind: input, shape index: {}]
  %s3 = inlined_call_operand.vmem [shape: f32[32,32], index: 3, kind: input, shape index: {}]
  %s4 = inlined_call_operand.vmem [shape: f32[32,1], index: 4, kind: input, shape index: {}]
  %s5 = inlined_call_operand.vmem [shape: f32[8,32], index: 5, kind: input, shape index: {}]
  %s6 = inlined_call_operand.vmem [shape: f32[8,1], index: 6, kind: input, shape index: {}]
  %s7 = inlined_call_operand.vmem [shape: f32[1,4], index: 7, kind: input, shape index: {}]
  %s8 = inlined_call_operand.hbm [shape: f32[8,256], index: 8, kind: output, shape index: {}]
  %s9 = sld [smem:[#allocation0]]
  $region46: #{tpu_custom_call.1} parent=0
    _
  %s11 = ssub.s32 1, %s9
  %s12 = scalar_select 0, %s11, %s9
  $region1: #{tpu_custom_call.1} parent=0
    #allocation2 [shape = 'u8[512]{0}', space=smem, size = 0x200, scoped, tag = 'input window, operand 7, single buffered']
    #allocation3 [shape = 's32[1]{0}', space=sflag, size = 0x4, scoped, tag = 'scoped memory for tpu_custom_call.1']
    #allocation4 [shape = 's32[1]{0}', space=sflag, size = 0x4, scoped, tag = 'scoped memory for tpu_custom_call.1']
    #allocation5 [shape = 'u8[8192]{0}', space=vmem, size = 0x2000, scoped, tag = 'output window, operand 0, single buffered']
    %13 = vsyncpa [#allocation4], 0
    %14 = vsyncpa [#allocation3], 0
    // Predicated region
    $region2: #{tpu_custom_call.1} parent=1 // pred_check
      _
    $region3: #{tpu_custom_call.1} parent=1 // pred_check_branch
      %16 = sbr.rel (0) target = $region5
    $region4: #{tpu_custom_call.1} parent=1 // pred_region
      _
    $region5: #{tpu_custom_call.1} parent=1 // pred_fallthru
      _
    // Predicated region
    $region6: #{tpu_custom_call.1} parent=1 // pred_check
      _
    $region7: #{tpu_custom_call.1} parent=1 // pred_check_branch
      %18 = sbr.rel (0) target = $region9
    $region8: #{tpu_custom_call.1} parent=1 // pred_region
      _
    $region9: #{tpu_custom_call.1} parent=1 // pred_fallthru
      _
    // Predicated region
    $region10: #{tpu_custom_call.1} parent=1 // pred_check
      _
    $region11: #{tpu_custom_call.1} parent=1 // pred_check_branch
      %20 = sbr.rel (0) target = $region13
    $region12: #{tpu_custom_call.1} parent=1 // pred_region
      _
    $region13: #{tpu_custom_call.1} parent=1 // pred_fallthru
      _
    // Predicated region
    $region14: #{tpu_custom_call.1} parent=1 // pred_check
      _
    $region15: #{tpu_custom_call.1} parent=1 // pred_check_branch
      %22 = sbr.rel (0) target = $region17
    $region16: #{tpu_custom_call.1} parent=1 // pred_region
      _
    $region17: #{tpu_custom_call.1} parent=1 // pred_fallthru
      _
    // Predicated region
    $region18: #{tpu_custom_call.1} parent=1 // pred_check
      _
    $region19: #{tpu_custom_call.1} parent=1 // pred_check_branch
      %24 = sbr.rel (0) target = $region21
    $region20: #{tpu_custom_call.1} parent=1 // pred_region
      _
    $region21: #{tpu_custom_call.1} parent=1 // pred_fallthru
      _
    // Predicated region
    $region22: #{tpu_custom_call.1} parent=1 // pred_check
      _
    $region23: #{tpu_custom_call.1} parent=1 // pred_check_branch
      %26 = sbr.rel (0) target = $region25
    $region24: #{tpu_custom_call.1} parent=1 // pred_region
      _
    $region25: #{tpu_custom_call.1} parent=1 // pred_fallthru
      _
    // Predicated region
    $region26: #{tpu_custom_call.1} parent=1 // pred_check
      _
    $region27: #{tpu_custom_call.1} parent=1 // pred_check_branch
      %28 = sbr.rel (0) target = $region29
    $region28: #{tpu_custom_call.1} parent=1 // pred_region
      _
    $region29: #{tpu_custom_call.1} parent=1 // pred_fallthru
      _
    // Predicated region
    $region30: #{tpu_custom_call.1} parent=1 // pred_check
      _
    $region31: #{tpu_custom_call.1} parent=1 // pred_check_branch
      %30 = sbr.rel (0) target = $region33
    $region32: #{tpu_custom_call.1} parent=1 // pred_region
      %s32 = ssub.s32 16, 16
      %33 = vsyncadd [#allocation4], %s32
      %s35 = sshll.u32 %s7, 4
      %s36 = int_to_ptr.vmem [resolvable:$true] %s35
      %38 = dma.vmem_to_smem %s36, 16, [#allocation2], [#allocation4]
    $region33: #{tpu_custom_call.1} parent=1 // pred_fallthru
      _
    // Predicated region
    $region34: #{tpu_custom_call.1} parent=1 // pred_check
      _
    $region35: #{tpu_custom_call.1} parent=1 // pred_check_branch
      %40 = sbr.rel (0) target = $region37
    $region36: #{tpu_custom_call.1} parent=1 // pred_region
      %41 = dma.done [#allocation4], 16
    $region37: #{tpu_custom_call.1} parent=1 // pred_fallthru
      _
    %42 = sfence
    %v43 = vld [vmem:[%s0] sm:$0xff]
    %v44 = vld [vmem:[%s0 + $0x8] sm:$0xff]
    %v45 = vld [vmem:[%s1] sm:$0xff]
    %v46 = vld [vmem:[%s1 + $0x8] sm:$0xff]
    %v47 = vld [vmem:[%s1 + $0x10] sm:$0xff]
    %v48 = vld [vmem:[%s1 + $0x18] sm:$0xff]
    %v49 = vld [vmem:[%s3] sm:$0xff]
    %v50 = vld [vmem:[%s3 + $0x8] sm:$0xff]
    %v51 = vld [vmem:[%s3 + $0x10] sm:$0xff]
    %v52 = vld [vmem:[%s3 + $0x18] sm:$0xff]
    %v53 = vld [vmem:[%s5] sm:$0xff]
    %v54 = vld [vmem:[%s2] sm:$0xff]
    %v55 = vld [vmem:[%s2 + $0x8] sm:$0xff]
    %v56 = vld [vmem:[%s2 + $0x10] sm:$0xff]
    %v57 = vld [vmem:[%s2 + $0x18] sm:$0xff]
    %59 = vset.pattern.permute.xlu0 0
    %60 = vperm.xlu0 %59, %v54
    %v61 = vpop.permute.xlu0 %60
    %64 = vset.pattern.permute.xlu0 0
    %65 = vperm.xlu0 %64, %v55
    %v66 = vpop.permute.xlu0 %65
    %69 = vset.pattern.permute.xlu0 0
    %70 = vperm.xlu0 %69, %v56
    %v71 = vpop.permute.xlu0 %70
    %74 = vset.pattern.permute.xlu0 0
    %75 = vperm.xlu0 %74, %v57
    %v76 = vpop.permute.xlu0 %75
    %v78 = vld [vmem:[%s4] sm:$0xff]
    %v79 = vld [vmem:[%s4 + $0x8] sm:$0xff]
    %v80 = vld [vmem:[%s4 + $0x10] sm:$0xff]
    %v81 = vld [vmem:[%s4 + $0x18] sm:$0xff]
    %83 = vset.pattern.permute.xlu0 0
    %84 = vperm.xlu0 %83, %v78
    %v85 = vpop.permute.xlu0 %84
    %88 = vset.pattern.permute.xlu0 0
    %89 = vperm.xlu0 %88, %v79
    %v90 = vpop.permute.xlu0 %89
    %93 = vset.pattern.permute.xlu0 0
    %94 = vperm.xlu0 %93, %v80
    %v95 = vpop.permute.xlu0 %94
    %98 = vset.pattern.permute.xlu0 0
    %99 = vperm.xlu0 %98, %v81
    %v100 = vpop.permute.xlu0 %99
    %v102 = vld [vmem:[%s6] sm:$0xff]
    %104 = vset.pattern.permute.xlu0 0
    %105 = vperm.xlu0 %104, %v102
    %v106 = vpop.permute.xlu0 %105
    %s108 = sld [smem:[#allocation2]]
    %vm109 = vcmask 64512
    %v111 = vsel %vm109, %v45, 0
    %v114 = vsel %vm109, %v46, 0
    %v117 = vsel %vm109, %v47, 0
    %v120 = vsel %vm109, %v48, 0
    %122 = vmatprep.subr.mxu0 0.0
    %123 = vmatpush1.msra.mxu0 0.0
    %124 = vmatprep.subr.mxu0 0.0
    %125 = vmatpush1.msra.mxu0 0.0
    %126 = vmatprep.subr.mxu0 0.0
    %127 = vmatpush1.msra.mxu0 0.0
    %128 = vmatprep.subr.mxu0 0.0
    %129 = vmatpush1.msra.mxu0 0.0
    %130 = vmatprep.subr.mxu0 0.0
    %131 = vmatpush1.msra.mxu0 0.0
    %132 = vmatprep.subr.mxu0 0.0
    %133 = vmatpush1.msra.mxu0 0.0
    %134 = vmatprep.subr.mxu0 0.0
    %135 = vmatpush1.msra.mxu0 0.0
    %136 = vmatprep.subr.mxu0 0.0
    %137 = vmatpush1.msra.mxu0 0.0
    %138 = vmatprep.subr.mxu0 0.0
    %139 = vmatpush1.msra.mxu0 0.0
    %140 = vmatprep.subr.mxu0 0.0
    %141 = vmatpush1.msra.mxu0 0.0
    %142 = vmatprep.subr.mxu0 0.0
    %143 = vmatpush1.msra.mxu0 0.0
    %144 = vmatprep.subr.mxu0 0.0
    %145 = vmatpush1.msra.mxu0 0.0
    %146 = vmatprep.subr.mxu0 0.0
    %147 = vmatpush1.msra.mxu0 0.0
    %148 = vmatprep.subr.mxu0 0.0
    %149 = vmatpush1.msra.mxu0 0.0
    %150 = vmatprep.subr.mxu0 0.0
    %151 = vmatpush1.msra.mxu0 0.0
    %152 = vmatprep.subr.mxu0 %v44
    %153 = vmatpush1.msra.mxu0 %v43
    %154 = vmatprep.subr.mxu0 0.0
    %155 = vmatpush2.msra.mxu0 0.0
    %156 = vmatprep.subr.mxu0 0.0
    %157 = vmatpush2.msra.mxu0 0.0
    %158 = vmatprep.subr.mxu0 0.0
    %159 = vmatpush2.msra.mxu0 0.0
    %160 = vmatprep.subr.mxu0 0.0
    %161 = vmatpush2.msra.mxu0 0.0
    %162 = vmatprep.subr.mxu0 0.0
    %163 = vmatpush2.msra.mxu0 0.0
    %164 = vmatprep.subr.mxu0 0.0
    %165 = vmatpush2.msra.mxu0 0.0
    %166 = vmatprep.subr.mxu0 0.0
    %167 = vmatpush2.msra.mxu0 0.0
    %168 = vmatprep.subr.mxu0 0.0
    %169 = vmatpush2.msra.mxu0 0.0
    %170 = vmatprep.subr.mxu0 0.0
    %171 = vmatpush2.msra.mxu0 0.0
    %172 = vmatprep.subr.mxu0 0.0
    %173 = vmatpush2.msra.mxu0 0.0
    %174 = vmatprep.subr.mxu0 0.0
    %175 = vmatpush2.msra.mxu0 0.0
    %176 = vmatprep.subr.mxu0 0.0
    %177 = vmatpush2.msra.mxu0 0.0
    %178 = vmatprep.subr.mxu0 0.0
    %179 = vmatpush2.msra.mxu0 0.0
    %180 = vmatprep.subr.mxu0 0.0
    %181 = vmatpush2.msra.mxu0 0.0
    %182 = vmatprep.subr.mxu0 0.0
    %183 = vmatpush2.msra.mxu0 0.0
    %184 = vmatprep.subr.mxu0 0.0
    %185 = vmatpush2.msra.mxu0 0.0
    %186 = vmatprep.mubr.f32.mxu0 0.0
    %187 = vmatmul.mubr.f32.gmra.mxu0 %v111
    %v188 = vpop.f32.mrf.mxu0
    %v189 = vadd.f32 %v61, %v188
    %v190 = vpop.f32.mrf.mxu0
    %v191 = vadd.f32 %v61, %v190
    %192 = vmatprep.mubr.f32.mxu0 0.0
    %193 = vmatmul.mubr.f32.gmra.mxu0 %v114
    %v194 = vpop.f32.mrf.mxu0
    %v195 = vadd.f32 %v66, %v194
    %v196 = vpop.f32.mrf.mxu0
    %v197 = vadd.f32 %v66, %v196
    %198 = vmatprep.mubr.f32.mxu0 0.0
    %199 = vmatmul.mubr.f32.gmra.mxu0 %v117
    %v200 = vpop.f32.mrf.mxu0
    %v201 = vadd.f32 %v71, %v200
    %v202 = vpop.f32.mrf.mxu0
    %v203 = vadd.f32 %v71, %v202
    %204 = vmatprep.mubr.f32.mxu0 0.0
    %205 = vmatmul.mubr.f32.gmra.mxu0 %v120
    %v206 = vpop.f32.mrf.mxu0
    %v207 = vadd.f32 %v76, %v206
    %v208 = vpop.f32.mrf.mxu0
    %v209 = vadd.f32 %v76, %v208
    %210 = vdwg.mxu0
    %v211 = vtanh.pop %v189
    %v212 = vtanh.pop %v191
    %v213 = vtanh.pop %v195
    %v214 = vtanh.pop %v197
    %v215 = vtanh.pop %v201
    %v216 = vtanh.pop %v203
    %v217 = vtanh.pop %v207
    %v218 = vtanh.pop %v209
    %vm219 = vcmask 261120
    %v221 = vsel %vm219, %v49, 0
    %v224 = vsel %vm219, %v50, 0
    %v227 = vsel %vm219, %v51, 0
    %v230 = vsel %vm219, %v52, 0
    %232 = vmatprep.subr.mxu0 0.0
    %233 = vmatpush1.msra.mxu0 0.0
    %234 = vmatprep.subr.mxu0 0.0
    %235 = vmatpush1.msra.mxu0 0.0
    %236 = vmatprep.subr.mxu0 0.0
    %237 = vmatpush1.msra.mxu0 0.0
    %238 = vmatprep.subr.mxu0 0.0
    %239 = vmatpush1.msra.mxu0 0.0
    %240 = vmatprep.subr.mxu0 0.0
    %241 = vmatpush1.msra.mxu0 0.0
    %242 = vmatprep.subr.mxu0 0.0
    %243 = vmatpush1.msra.mxu0 0.0
    %244 = vmatprep.subr.mxu0 0.0
    %245 = vmatpush1.msra.mxu0 0.0
    %246 = vmatprep.subr.mxu0 0.0
    %247 = vmatpush1.msra.mxu0 0.0
    %248 = vmatprep.subr.mxu0 0.0
    %249 = vmatpush1.msra.mxu0 0.0
    %250 = vmatprep.subr.mxu0 0.0
    %251 = vmatpush1.msra.mxu0 0.0
    %252 = vmatprep.subr.mxu0 0.0
    %253 = vmatpush1.msra.mxu0 0.0
    %254 = vmatprep.subr.mxu0 0.0
    %255 = vmatpush1.msra.mxu0 0.0
    %256 = vmatprep.subr.mxu0 %v218
    %257 = vmatpush1.msra.mxu0 %v217
    %258 = vmatprep.subr.mxu0 %v216
    %259 = vmatpush1.msra.mxu0 %v215
    %260 = vmatprep.subr.mxu0 %v214
    %261 = vmatpush1.msra.mxu0 %v213
    %262 = vmatprep.subr.mxu0 %v212
    %263 = vmatpush1.msra.mxu0 %v211
    %264 = vmatprep.subr.mxu0 0.0
    %265 = vmatpush2.msra.mxu0 0.0
    %266 = vmatprep.subr.mxu0 0.0
    %267 = vmatpush2.msra.mxu0 0.0
    %268 = vmatprep.subr.mxu0 0.0
    %269 = vmatpush2.msra.mxu0 0.0
    %270 = vmatprep.subr.mxu0 0.0
    %271 = vmatpush2.msra.mxu0 0.0
    %272 = vmatprep.subr.mxu0 0.0
    %273 = vmatpush2.msra.mxu0 0.0
    %274 = vmatprep.subr.mxu0 0.0
    %275 = vmatpush2.msra.mxu0 0.0
    %276 = vmatprep.subr.mxu0 0.0
    %277 = vmatpush2.msra.mxu0 0.0
    %278 = vmatprep.subr.mxu0 0.0
    %279 = vmatpush2.msra.mxu0 0.0
    %280 = vmatprep.subr.mxu0 0.0
    %281 = vmatpush2.msra.mxu0 0.0
    %282 = vmatprep.subr.mxu0 0.0
    %283 = vmatpush2.msra.mxu0 0.0
    %284 = vmatprep.subr.mxu0 0.0
    %285 = vmatpush2.msra.mxu0 0.0
    %286 = vmatprep.subr.mxu0 0.0
    %287 = vmatpush2.msra.mxu0 0.0
    %288 = vmatprep.subr.mxu0 0.0
    %289 = vmatpush2.msra.mxu0 0.0
    %290 = vmatprep.subr.mxu0 0.0
    %291 = vmatpush2.msra.mxu0 0.0
    %292 = vmatprep.subr.mxu0 0.0
    %293 = vmatpush2.msra.mxu0 0.0
    %294 = vmatprep.subr.mxu0 0.0
    %295 = vmatpush2.msra.mxu0 0.0
    %296 = vmatprep.mubr.f32.mxu0 0.0
    %297 = vmatmul.mubr.f32.gmra.mxu0 %v221
    %v298 = vpop.f32.mrf.mxu0
    %v299 = vadd.f32 %v85, %v298
    %v300 = vpop.f32.mrf.mxu0
    %v301 = vadd.f32 %v85, %v300
    %302 = vmatprep.mubr.f32.mxu0 0.0
    %303 = vmatmul.mubr.f32.gmra.mxu0 %v224
    %v304 = vpop.f32.mrf.mxu0
    %v305 = vadd.f32 %v90, %v304
    %v306 = vpop.f32.mrf.mxu0
    %v307 = vadd.f32 %v90, %v306
    %308 = vmatprep.mubr.f32.mxu0 0.0
    %309 = vmatmul.mubr.f32.gmra.mxu0 %v227
    %v310 = vpop.f32.mrf.mxu0
    %v311 = vadd.f32 %v95, %v310
    %v312 = vpop.f32.mrf.mxu0
    %v313 = vadd.f32 %v95, %v312
    %314 = vmatprep.mubr.f32.mxu0 0.0
    %315 = vmatmul.mubr.f32.gmra.mxu0 %v230
    %v316 = vpop.f32.mrf.mxu0
    %v317 = vadd.f32 %v100, %v316
    %v318 = vpop.f32.mrf.mxu0
    %v319 = vadd.f32 %v100, %v318
    %320 = vdwg.mxu0
    %v321 = vtanh.pop %v299
    %v322 = vtanh.pop %v301
    %v323 = vtanh.pop %v305
    %v324 = vtanh.pop %v307
    %v325 = vtanh.pop %v311
    %v326 = vtanh.pop %v313
    %v327 = vtanh.pop %v317
    %v328 = vtanh.pop %v319
    %v330 = vsel %vm219, %v53, 0
    %332 = vmatprep.subr.mxu0 0.0
    %333 = vmatpush1.msra.mxu0 0.0
    %334 = vmatprep.subr.mxu0 0.0
    %335 = vmatpush1.msra.mxu0 0.0
    %336 = vmatprep.subr.mxu0 0.0
    %337 = vmatpush1.msra.mxu0 0.0
    %338 = vmatprep.subr.mxu0 0.0
    %339 = vmatpush1.msra.mxu0 0.0
    %340 = vmatprep.subr.mxu0 0.0
    %341 = vmatpush1.msra.mxu0 0.0
    %342 = vmatprep.subr.mxu0 0.0
    %343 = vmatpush1.msra.mxu0 0.0
    %344 = vmatprep.subr.mxu0 0.0
    %345 = vmatpush1.msra.mxu0 0.0
    %346 = vmatprep.subr.mxu0 0.0
    %347 = vmatpush1.msra.mxu0 0.0
    %348 = vmatprep.subr.mxu0 0.0
    %349 = vmatpush1.msra.mxu0 0.0
    %350 = vmatprep.subr.mxu0 0.0
    %351 = vmatpush1.msra.mxu0 0.0
    %352 = vmatprep.subr.mxu0 0.0
    %353 = vmatpush1.msra.mxu0 0.0
    %354 = vmatprep.subr.mxu0 0.0
    %355 = vmatpush1.msra.mxu0 0.0
    %356 = vmatprep.subr.mxu0 %v328
    %357 = vmatpush1.msra.mxu0 %v327
    %358 = vmatprep.subr.mxu0 %v326
    %359 = vmatpush1.msra.mxu0 %v325
    %360 = vmatprep.subr.mxu0 %v324
    %361 = vmatpush1.msra.mxu0 %v323
    %362 = vmatprep.subr.mxu0 %v322
    %363 = vmatpush1.msra.mxu0 %v321
    %364 = vmatprep.subr.mxu0 0.0
    %365 = vmatpush2.msra.mxu0 0.0
    %366 = vmatprep.subr.mxu0 0.0
    %367 = vmatpush2.msra.mxu0 0.0
    %368 = vmatprep.subr.mxu0 0.0
    %369 = vmatpush2.msra.mxu0 0.0
    %370 = vmatprep.subr.mxu0 0.0
    %371 = vmatpush2.msra.mxu0 0.0
    %372 = vmatprep.subr.mxu0 0.0
    %373 = vmatpush2.msra.mxu0 0.0
    %374 = vmatprep.subr.mxu0 0.0
    %375 = vmatpush2.msra.mxu0 0.0
    %376 = vmatprep.subr.mxu0 0.0
    %377 = vmatpush2.msra.mxu0 0.0
    %378 = vmatprep.subr.mxu0 0.0
    %379 = vmatpush2.msra.mxu0 0.0
    %380 = vmatprep.subr.mxu0 0.0
    %381 = vmatpush2.msra.mxu0 0.0
    %382 = vmatprep.subr.mxu0 0.0
    %383 = vmatpush2.msra.mxu0 0.0
    %384 = vmatprep.subr.mxu0 0.0
    %385 = vmatpush2.msra.mxu0 0.0
    %386 = vmatprep.subr.mxu0 0.0
    %387 = vmatpush2.msra.mxu0 0.0
    %388 = vmatprep.subr.mxu0 0.0
    %389 = vmatpush2.msra.mxu0 0.0
    %390 = vmatprep.subr.mxu0 0.0
    %391 = vmatpush2.msra.mxu0 0.0
    %392 = vmatprep.subr.mxu0 0.0
    %393 = vmatpush2.msra.mxu0 0.0
    %394 = vmatprep.subr.mxu0 0.0
    %395 = vmatpush2.msra.mxu0 0.0
    %396 = vmatprep.mubr.f32.mxu0 0.0
    %397 = vmatmul.mubr.f32.gmra.mxu0 %v330
    %v398 = vpop.f32.mrf.mxu0
    %v399 = vadd.f32 %v106, %v398
    %v400 = vpop.f32.mrf.mxu0
    %v401 = vadd.f32 %v106, %v400
    %402 = vdwg.mxu0
    %v403 = vstv %s108
    %v404 = vmul.f32 %v403, %v399
    %v405 = vmul.f32 %v403, %v401
    %v406 = vadd.f32 %v43, %v404
    %v407 = vadd.f32 %v44, %v405
    %s408 = sld [smem:[#allocation2 + $0x1]]
    %409 = vmatprep.subr.mxu0 0.0
    %410 = vmatpush1.msra.mxu0 0.0
    %411 = vmatprep.subr.mxu0 0.0
    %412 = vmatpush1.msra.mxu0 0.0
    %413 = vmatprep.subr.mxu0 0.0
    %414 = vmatpush1.msra.mxu0 0.0
    %415 = vmatprep.subr.mxu0 0.0
    %416 = vmatpush1.msra.mxu0 0.0
    %417 = vmatprep.subr.mxu0 0.0
    %418 = vmatpush1.msra.mxu0 0.0
    %419 = vmatprep.subr.mxu0 0.0
    %420 = vmatpush1.msra.mxu0 0.0
    %421 = vmatprep.subr.mxu0 0.0
    %422 = vmatpush1.msra.mxu0 0.0
    %423 = vmatprep.subr.mxu0 0.0
    %424 = vmatpush1.msra.mxu0 0.0
    %425 = vmatprep.subr.mxu0 0.0
    %426 = vmatpush1.msra.mxu0 0.0
    %427 = vmatprep.subr.mxu0 0.0
    %428 = vmatpush1.msra.mxu0 0.0
    %429 = vmatprep.subr.mxu0 0.0
    %430 = vmatpush1.msra.mxu0 0.0
    %431 = vmatprep.subr.mxu0 0.0
    %432 = vmatpush1.msra.mxu0 0.0
    %433 = vmatprep.subr.mxu0 0.0
    %434 = vmatpush1.msra.mxu0 0.0
    %435 = vmatprep.subr.mxu0 0.0
    %436 = vmatpush1.msra.mxu0 0.0
    %437 = vmatprep.subr.mxu0 0.0
    %438 = vmatpush1.msra.mxu0 0.0
    %439 = vmatprep.subr.mxu0 %v407
    %440 = vmatpush1.msra.mxu0 %v406
    %441 = vmatprep.subr.mxu0 0.0
    %442 = vmatpush2.msra.mxu0 0.0
    %443 = vmatprep.subr.mxu0 0.0
    %444 = vmatpush2.msra.mxu0 0.0
    %445 = vmatprep.subr.mxu0 0.0
    %446 = vmatpush2.msra.mxu0 0.0
    %447 = vmatprep.subr.mxu0 0.0
    %448 = vmatpush2.msra.mxu0 0.0
    %449 = vmatprep.subr.mxu0 0.0
    %450 = vmatpush2.msra.mxu0 0.0
    %451 = vmatprep.subr.mxu0 0.0
    %452 = vmatpush2.msra.mxu0 0.0
    %453 = vmatprep.subr.mxu0 0.0
    %454 = vmatpush2.msra.mxu0 0.0
    %455 = vmatprep.subr.mxu0 0.0
    %456 = vmatpush2.msra.mxu0 0.0
    %457 = vmatprep.subr.mxu0 0.0
    %458 = vmatpush2.msra.mxu0 0.0
    %459 = vmatprep.subr.mxu0 0.0
    %460 = vmatpush2.msra.mxu0 0.0
    %461 = vmatprep.subr.mxu0 0.0
    %462 = vmatpush2.msra.mxu0 0.0
    %463 = vmatprep.subr.mxu0 0.0
    %464 = vmatpush2.msra.mxu0 0.0
    %465 = vmatprep.subr.mxu0 0.0
    %466 = vmatpush2.msra.mxu0 0.0
    %467 = vmatprep.subr.mxu0 0.0
    %468 = vmatpush2.msra.mxu0 0.0
    %469 = vmatprep.subr.mxu0 0.0
    %470 = vmatpush2.msra.mxu0 0.0
    %471 = vmatprep.subr.mxu0 0.0
    %472 = vmatpush2.msra.mxu0 0.0
    %473 = vmatprep.mubr.f32.mxu0 0.0
    %474 = vmatmul.mubr.f32.gmra.mxu0 %v111
    %v475 = vpop.f32.mrf.mxu0
    %v476 = vadd.f32 %v61, %v475
    %v477 = vpop.f32.mrf.mxu0
    %v478 = vadd.f32 %v61, %v477
    %479 = vmatprep.mubr.f32.mxu0 0.0
    %480 = vmatmul.mubr.f32.gmra.mxu0 %v114
    %v481 = vpop.f32.mrf.mxu0
    %v482 = vadd.f32 %v66, %v481
    %v483 = vpop.f32.mrf.mxu0
    %v484 = vadd.f32 %v66, %v483
    %485 = vmatprep.mubr.f32.mxu0 0.0
    %486 = vmatmul.mubr.f32.gmra.mxu0 %v117
    %v487 = vpop.f32.mrf.mxu0
    %v488 = vadd.f32 %v71, %v487
    %v489 = vpop.f32.mrf.mxu0
    %v490 = vadd.f32 %v71, %v489
    %491 = vmatprep.mubr.f32.mxu0 0.0
    %492 = vmatmul.mubr.f32.gmra.mxu0 %v120
    %v493 = vpop.f32.mrf.mxu0
    %v494 = vadd.f32 %v76, %v493
    %v495 = vpop.f32.mrf.mxu0
    %v496 = vadd.f32 %v76, %v495
    %497 = vdwg.mxu0
    %v498 = vtanh.pop %v476
    %v499 = vtanh.pop %v478
    %v500 = vtanh.pop %v482
    %v501 = vtanh.pop %v484
    %v502 = vtanh.pop %v488
    %v503 = vtanh.pop %v490
    %v504 = vtanh.pop %v494
    %v505 = vtanh.pop %v496
    %506 = vmatprep.subr.mxu0 0.0
    %507 = vmatpush1.msra.mxu0 0.0
    %508 = vmatprep.subr.mxu0 0.0
    %509 = vmatpush1.msra.mxu0 0.0
    %510 = vmatprep.subr.mxu0 0.0
    %511 = vmatpush1.msra.mxu0 0.0
    %512 = vmatprep.subr.mxu0 0.0
    %513 = vmatpush1.msra.mxu0 0.0
    %514 = vmatprep.subr.mxu0 0.0
    %515 = vmatpush1.msra.mxu0 0.0
    %516 = vmatprep.subr.mxu0 0.0
    %517 = vmatpush1.msra.mxu0 0.0
    %518 = vmatprep.subr.mxu0 0.0
    %519 = vmatpush1.msra.mxu0 0.0
    %520 = vmatprep.subr.mxu0 0.0
    %521 = vmatpush1.msra.mxu0 0.0
    %522 = vmatprep.subr.mxu0 0.0
    %523 = vmatpush1.msra.mxu0 0.0
    %524 = vmatprep.subr.mxu0 0.0
    %525 = vmatpush1.msra.mxu0 0.0
    %526 = vmatprep.subr.mxu0 0.0
    %527 = vmatpush1.msra.mxu0 0.0
    %528 = vmatprep.subr.mxu0 0.0
    %529 = vmatpush1.msra.mxu0 0.0
    %530 = vmatprep.subr.mxu0 %v505
    %531 = vmatpush1.msra.mxu0 %v504
    %532 = vmatprep.subr.mxu0 %v503
    %533 = vmatpush1.msra.mxu0 %v502
    %534 = vmatprep.subr.mxu0 %v501
    %535 = vmatpush1.msra.mxu0 %v500
    %536 = vmatprep.subr.mxu0 %v499
    %537 = vmatpush1.msra.mxu0 %v498
    %538 = vmatprep.subr.mxu0 0.0
    %539 = vmatpush2.msra.mxu0 0.0
    %540 = vmatprep.subr.mxu0 0.0
    %541 = vmatpush2.msra.mxu0 0.0
    %542 = vmatprep.subr.mxu0 0.0
    %543 = vmatpush2.msra.mxu0 0.0
    %544 = vmatprep.subr.mxu0 0.0
    %545 = vmatpush2.msra.mxu0 0.0
    %546 = vmatprep.subr.mxu0 0.0
    %547 = vmatpush2.msra.mxu0 0.0
    %548 = vmatprep.subr.mxu0 0.0
    %549 = vmatpush2.msra.mxu0 0.0
    %550 = vmatprep.subr.mxu0 0.0
    %551 = vmatpush2.msra.mxu0 0.0
    %552 = vmatprep.subr.mxu0 0.0
    %553 = vmatpush2.msra.mxu0 0.0
    %554 = vmatprep.subr.mxu0 0.0
    %555 = vmatpush2.msra.mxu0 0.0
    %556 = vmatprep.subr.mxu0 0.0
    %557 = vmatpush2.msra.mxu0 0.0
    %558 = vmatprep.subr.mxu0 0.0
    %559 = vmatpush2.msra.mxu0 0.0
    %560 = vmatprep.subr.mxu0 0.0
    %561 = vmatpush2.msra.mxu0 0.0
    %562 = vmatprep.subr.mxu0 0.0
    %563 = vmatpush2.msra.mxu0 0.0
    %564 = vmatprep.subr.mxu0 0.0
    %565 = vmatpush2.msra.mxu0 0.0
    %566 = vmatprep.subr.mxu0 0.0
    %567 = vmatpush2.msra.mxu0 0.0
    %568 = vmatprep.subr.mxu0 0.0
    %569 = vmatpush2.msra.mxu0 0.0
    %570 = vmatprep.mubr.f32.mxu0 0.0
    %571 = vmatmul.mubr.f32.gmra.mxu0 %v221
    %v572 = vpop.f32.mrf.mxu0
    %v573 = vadd.f32 %v85, %v572
    %v574 = vpop.f32.mrf.mxu0
    %v575 = vadd.f32 %v85, %v574
    %576 = vmatprep.mubr.f32.mxu0 0.0
    %577 = vmatmul.mubr.f32.gmra.mxu0 %v224
    %v578 = vpop.f32.mrf.mxu0
    %v579 = vadd.f32 %v90, %v578
    %v580 = vpop.f32.mrf.mxu0
    %v581 = vadd.f32 %v90, %v580
    %582 = vmatprep.mubr.f32.mxu0 0.0
    %583 = vmatmul.mubr.f32.gmra.mxu0 %v227
    %v584 = vpop.f32.mrf.mxu0
    %v585 = vadd.f32 %v95, %v584
    %v586 = vpop.f32.mrf.mxu0
    %v587 = vadd.f32 %v95, %v586
    %588 = vmatprep.mubr.f32.mxu0 0.0
    %589 = vmatmul.mubr.f32.gmra.mxu0 %v230
    %v590 = vpop.f32.mrf.mxu0
    %v591 = vadd.f32 %v100, %v590
    %v592 = vpop.f32.mrf.mxu0
    %v593 = vadd.f32 %v100, %v592
    %594 = vdwg.mxu0
    %v595 = vtanh.pop %v573
    %v596 = vtanh.pop %v575
    %v597 = vtanh.pop %v579
    %v598 = vtanh.pop %v581
    %v599 = vtanh.pop %v585
    %v600 = vtanh.pop %v587
    %v601 = vtanh.pop %v591
    %v602 = vtanh.pop %v593
    %603 = vmatprep.subr.mxu0 0.0
    %604 = vmatpush1.msra.mxu0 0.0
    %605 = vmatprep.subr.mxu0 0.0
    %606 = vmatpush1.msra.mxu0 0.0
    %607 = vmatprep.subr.mxu0 0.0
    %608 = vmatpush1.msra.mxu0 0.0
    %609 = vmatprep.subr.mxu0 0.0
    %610 = vmatpush1.msra.mxu0 0.0
    %611 = vmatprep.subr.mxu0 0.0
    %612 = vmatpush1.msra.mxu0 0.0
    %613 = vmatprep.subr.mxu0 0.0
    %614 = vmatpush1.msra.mxu0 0.0
    %615 = vmatprep.subr.mxu0 0.0
    %616 = vmatpush1.msra.mxu0 0.0
    %617 = vmatprep.subr.mxu0 0.0
    %618 = vmatpush1.msra.mxu0 0.0
    %619 = vmatprep.subr.mxu0 0.0
    %620 = vmatpush1.msra.mxu0 0.0
    %621 = vmatprep.subr.mxu0 0.0
    %622 = vmatpush1.msra.mxu0 0.0
    %623 = vmatprep.subr.mxu0 0.0
    %624 = vmatpush1.msra.mxu0 0.0
    %625 = vmatprep.subr.mxu0 0.0
    %626 = vmatpush1.msra.mxu0 0.0
    %627 = vmatprep.subr.mxu0 %v602
    %628 = vmatpush1.msra.mxu0 %v601
    %629 = vmatprep.subr.mxu0 %v600
    %630 = vmatpush1.msra.mxu0 %v599
    %631 = vmatprep.subr.mxu0 %v598
    %632 = vmatpush1.msra.mxu0 %v597
    %633 = vmatprep.subr.mxu0 %v596
    %634 = vmatpush1.msra.mxu0 %v595
    %635 = vmatprep.subr.mxu0 0.0
    %636 = vmatpush2.msra.mxu0 0.0
    %637 = vmatprep.subr.mxu0 0.0
    %638 = vmatpush2.msra.mxu0 0.0
    %639 = vmatprep.subr.mxu0 0.0
    %640 = vmatpush2.msra.mxu0 0.0
    %641 = vmatprep.subr.mxu0 0.0
    %642 = vmatpush2.msra.mxu0 0.0
    %643 = vmatprep.subr.mxu0 0.0
    %644 = vmatpush2.msra.mxu0 0.0
    %645 = vmatprep.subr.mxu0 0.0
    %646 = vmatpush2.msra.mxu0 0.0
    %647 = vmatprep.subr.mxu0 0.0
    %648 = vmatpush2.msra.mxu0 0.0
    %649 = vmatprep.subr.mxu0 0.0
    %650 = vmatpush2.msra.mxu0 0.0
    %651 = vmatprep.subr.mxu0 0.0
    %652 = vmatpush2.msra.mxu0 0.0
    %653 = vmatprep.subr.mxu0 0.0
    %654 = vmatpush2.msra.mxu0 0.0
    %655 = vmatprep.subr.mxu0 0.0
    %656 = vmatpush2.msra.mxu0 0.0
    %657 = vmatprep.subr.mxu0 0.0
    %658 = vmatpush2.msra.mxu0 0.0
    %659 = vmatprep.subr.mxu0 0.0
    %660 = vmatpush2.msra.mxu0 0.0
    %661 = vmatprep.subr.mxu0 0.0
    %662 = vmatpush2.msra.mxu0 0.0
    %663 = vmatprep.subr.mxu0 0.0
    %664 = vmatpush2.msra.mxu0 0.0
    %665 = vmatprep.subr.mxu0 0.0
    %666 = vmatpush2.msra.mxu0 0.0
    %667 = vmatprep.mubr.f32.mxu0 0.0
    %668 = vmatmul.mubr.f32.gmra.mxu0 %v330
    %v669 = vpop.f32.mrf.mxu0
    %v670 = vadd.f32 %v106, %v669
    %v671 = vpop.f32.mrf.mxu0
    %v672 = vadd.f32 %v106, %v671
    %673 = vdwg.mxu0
    %v674 = vstv %s408
    %v675 = vmul.f32 %v674, %v670
    %v676 = vmul.f32 %v674, %v672
    %v677 = vadd.f32 %v406, %v675
    %v678 = vadd.f32 %v407, %v676
    %s679 = sld [smem:[#allocation2 + $0x2]]
    %680 = vmatprep.subr.mxu0 0.0
    %681 = vmatpush1.msra.mxu0 0.0
    %682 = vmatprep.subr.mxu0 0.0
    %683 = vmatpush1.msra.mxu0 0.0
    %684 = vmatprep.subr.mxu0 0.0
    %685 = vmatpush1.msra.mxu0 0.0
    %686 = vmatprep.subr.mxu0 0.0
    %687 = vmatpush1.msra.mxu0 0.0
    %688 = vmatprep.subr.mxu0 0.0
    %689 = vmatpush1.msra.mxu0 0.0
    %690 = vmatprep.subr.mxu0 0.0
    %691 = vmatpush1.msra.mxu0 0.0
    %692 = vmatprep.subr.mxu0 0.0
    %693 = vmatpush1.msra.mxu0 0.0
    %694 = vmatprep.subr.mxu0 0.0
    %695 = vmatpush1.msra.mxu0 0.0
    %696 = vmatprep.subr.mxu0 0.0
    %697 = vmatpush1.msra.mxu0 0.0
    %698 = vmatprep.subr.mxu0 0.0
    %699 = vmatpush1.msra.mxu0 0.0
    %700 = vmatprep.subr.mxu0 0.0
    %701 = vmatpush1.msra.mxu0 0.0
    %702 = vmatprep.subr.mxu0 0.0
    %703 = vmatpush1.msra.mxu0 0.0
    %704 = vmatprep.subr.mxu0 0.0
    %705 = vmatpush1.msra.mxu0 0.0
    %706 = vmatprep.subr.mxu0 0.0
    %707 = vmatpush1.msra.mxu0 0.0
    %708 = vmatprep.subr.mxu0 0.0
    %709 = vmatpush1.msra.mxu0 0.0
    %710 = vmatprep.subr.mxu0 %v678
    %711 = vmatpush1.msra.mxu0 %v677
    %712 = vmatprep.subr.mxu0 0.0
    %713 = vmatpush2.msra.mxu0 0.0
    %714 = vmatprep.subr.mxu0 0.0
    %715 = vmatpush2.msra.mxu0 0.0
    %716 = vmatprep.subr.mxu0 0.0
    %717 = vmatpush2.msra.mxu0 0.0
    %718 = vmatprep.subr.mxu0 0.0
    %719 = vmatpush2.msra.mxu0 0.0
    %720 = vmatprep.subr.mxu0 0.0
    %721 = vmatpush2.msra.mxu0 0.0
    %722 = vmatprep.subr.mxu0 0.0
    %723 = vmatpush2.msra.mxu0 0.0
    %724 = vmatprep.subr.mxu0 0.0
    %725 = vmatpush2.msra.mxu0 0.0
    %726 = vmatprep.subr.mxu0 0.0
    %727 = vmatpush2.msra.mxu0 0.0
    %728 = vmatprep.subr.mxu0 0.0
    %729 = vmatpush2.msra.mxu0 0.0
    %730 = vmatprep.subr.mxu0 0.0
    %731 = vmatpush2.msra.mxu0 0.0
    %732 = vmatprep.subr.mxu0 0.0
    %733 = vmatpush2.msra.mxu0 0.0
    %734 = vmatprep.subr.mxu0 0.0
    %735 = vmatpush2.msra.mxu0 0.0
    %736 = vmatprep.subr.mxu0 0.0
    %737 = vmatpush2.msra.mxu0 0.0
    %738 = vmatprep.subr.mxu0 0.0
    %739 = vmatpush2.msra.mxu0 0.0
    %740 = vmatprep.subr.mxu0 0.0
    %741 = vmatpush2.msra.mxu0 0.0
    %742 = vmatprep.subr.mxu0 0.0
    %743 = vmatpush2.msra.mxu0 0.0
    %744 = vmatprep.mubr.f32.mxu0 0.0
    %745 = vmatmul.mubr.f32.gmra.mxu0 %v111
    %v746 = vpop.f32.mrf.mxu0
    %v747 = vadd.f32 %v61, %v746
    %v748 = vpop.f32.mrf.mxu0
    %v749 = vadd.f32 %v61, %v748
    %750 = vmatprep.mubr.f32.mxu0 0.0
    %751 = vmatmul.mubr.f32.gmra.mxu0 %v114
    %v752 = vpop.f32.mrf.mxu0
    %v753 = vadd.f32 %v66, %v752
    %v754 = vpop.f32.mrf.mxu0
    %v755 = vadd.f32 %v66, %v754
    %756 = vmatprep.mubr.f32.mxu0 0.0
    %757 = vmatmul.mubr.f32.gmra.mxu0 %v117
    %v758 = vpop.f32.mrf.mxu0
    %v759 = vadd.f32 %v71, %v758
    %v760 = vpop.f32.mrf.mxu0
    %v761 = vadd.f32 %v71, %v760
    %762 = vmatprep.mubr.f32.mxu0 0.0
    %763 = vmatmul.mubr.f32.gmra.mxu0 %v120
    %v764 = vpop.f32.mrf.mxu0
    %v765 = vadd.f32 %v76, %v764
    %v766 = vpop.f32.mrf.mxu0
    %v767 = vadd.f32 %v76, %v766
    %768 = vdwg.mxu0
    %v769 = vtanh.pop %v747
    %v770 = vtanh.pop %v749
    %v771 = vtanh.pop %v753
    %v772 = vtanh.pop %v755
    %v773 = vtanh.pop %v759
    %v774 = vtanh.pop %v761
    %v775 = vtanh.pop %v765
    %v776 = vtanh.pop %v767
    %777 = vmatprep.subr.mxu0 0.0
    %778 = vmatpush1.msra.mxu0 0.0
    %779 = vmatprep.subr.mxu0 0.0
    %780 = vmatpush1.msra.mxu0 0.0
    %781 = vmatprep.subr.mxu0 0.0
    %782 = vmatpush1.msra.mxu0 0.0
    %783 = vmatprep.subr.mxu0 0.0
    %784 = vmatpush1.msra.mxu0 0.0
    %785 = vmatprep.subr.mxu0 0.0
    %786 = vmatpush1.msra.mxu0 0.0
    %787 = vmatprep.subr.mxu0 0.0
    %788 = vmatpush1.msra.mxu0 0.0
    %789 = vmatprep.subr.mxu0 0.0
    %790 = vmatpush1.msra.mxu0 0.0
    %791 = vmatprep.subr.mxu0 0.0
    %792 = vmatpush1.msra.mxu0 0.0
    %793 = vmatprep.subr.mxu0 0.0
    %794 = vmatpush1.msra.mxu0 0.0
    %795 = vmatprep.subr.mxu0 0.0
    %796 = vmatpush1.msra.mxu0 0.0
    %797 = vmatprep.subr.mxu0 0.0
    %798 = vmatpush1.msra.mxu0 0.0
    %799 = vmatprep.subr.mxu0 0.0
    %800 = vmatpush1.msra.mxu0 0.0
    %801 = vmatprep.subr.mxu0 %v776
    %802 = vmatpush1.msra.mxu0 %v775
    %803 = vmatprep.subr.mxu0 %v774
    %804 = vmatpush1.msra.mxu0 %v773
    %805 = vmatprep.subr.mxu0 %v772
    %806 = vmatpush1.msra.mxu0 %v771
    %807 = vmatprep.subr.mxu0 %v770
    %808 = vmatpush1.msra.mxu0 %v769
    %809 = vmatprep.subr.mxu0 0.0
    %810 = vmatpush2.msra.mxu0 0.0
    %811 = vmatprep.subr.mxu0 0.0
    %812 = vmatpush2.msra.mxu0 0.0
    %813 = vmatprep.subr.mxu0 0.0
    %814 = vmatpush2.msra.mxu0 0.0
    %815 = vmatprep.subr.mxu0 0.0
    %816 = vmatpush2.msra.mxu0 0.0
    %817 = vmatprep.subr.mxu0 0.0
    %818 = vmatpush2.msra.mxu0 0.0
    %819 = vmatprep.subr.mxu0 0.0
    %820 = vmatpush2.msra.mxu0 0.0
    %821 = vmatprep.subr.mxu0 0.0
    %822 = vmatpush2.msra.mxu0 0.0
    %823 = vmatprep.subr.mxu0 0.0
    %824 = vmatpush2.msra.mxu0 0.0
    %825 = vmatprep.subr.mxu0 0.0
    %826 = vmatpush2.msra.mxu0 0.0
    %827 = vmatprep.subr.mxu0 0.0
    %828 = vmatpush2.msra.mxu0 0.0
    %829 = vmatprep.subr.mxu0 0.0
    %830 = vmatpush2.msra.mxu0 0.0
    %831 = vmatprep.subr.mxu0 0.0
    %832 = vmatpush2.msra.mxu0 0.0
    %833 = vmatprep.subr.mxu0 0.0
    %834 = vmatpush2.msra.mxu0 0.0
    %835 = vmatprep.subr.mxu0 0.0
    %836 = vmatpush2.msra.mxu0 0.0
    %837 = vmatprep.subr.mxu0 0.0
    %838 = vmatpush2.msra.mxu0 0.0
    %839 = vmatprep.subr.mxu0 0.0
    %840 = vmatpush2.msra.mxu0 0.0
    %841 = vmatprep.mubr.f32.mxu0 0.0
    %842 = vmatmul.mubr.f32.gmra.mxu0 %v221
    %v843 = vpop.f32.mrf.mxu0
    %v844 = vadd.f32 %v85, %v843
    %v845 = vpop.f32.mrf.mxu0
    %v846 = vadd.f32 %v85, %v845
    %847 = vmatprep.mubr.f32.mxu0 0.0
    %848 = vmatmul.mubr.f32.gmra.mxu0 %v224
    %v849 = vpop.f32.mrf.mxu0
    %v850 = vadd.f32 %v90, %v849
    %v851 = vpop.f32.mrf.mxu0
    %v852 = vadd.f32 %v90, %v851
    %853 = vmatprep.mubr.f32.mxu0 0.0
    %854 = vmatmul.mubr.f32.gmra.mxu0 %v227
    %v855 = vpop.f32.mrf.mxu0
    %v856 = vadd.f32 %v95, %v855
    %v857 = vpop.f32.mrf.mxu0
    %v858 = vadd.f32 %v95, %v857
    %859 = vmatprep.mubr.f32.mxu0 0.0
    %860 = vmatmul.mubr.f32.gmra.mxu0 %v230
    %v861 = vpop.f32.mrf.mxu0
    %v862 = vadd.f32 %v100, %v861
    %v863 = vpop.f32.mrf.mxu0
    %v864 = vadd.f32 %v100, %v863
    %865 = vdwg.mxu0
    %v866 = vtanh.pop %v844
    %v867 = vtanh.pop %v846
    %v868 = vtanh.pop %v850
    %v869 = vtanh.pop %v852
    %v870 = vtanh.pop %v856
    %v871 = vtanh.pop %v858
    %v872 = vtanh.pop %v862
    %v873 = vtanh.pop %v864
    %874 = vmatprep.subr.mxu0 0.0
    %875 = vmatpush1.msra.mxu0 0.0
    %876 = vmatprep.subr.mxu0 0.0
    %877 = vmatpush1.msra.mxu0 0.0
    %878 = vmatprep.subr.mxu0 0.0
    %879 = vmatpush1.msra.mxu0 0.0
    %880 = vmatprep.subr.mxu0 0.0
    %881 = vmatpush1.msra.mxu0 0.0
    %882 = vmatprep.subr.mxu0 0.0
    %883 = vmatpush1.msra.mxu0 0.0
    %884 = vmatprep.subr.mxu0 0.0
    %885 = vmatpush1.msra.mxu0 0.0
    %886 = vmatprep.subr.mxu0 0.0
    %887 = vmatpush1.msra.mxu0 0.0
    %888 = vmatprep.subr.mxu0 0.0
    %889 = vmatpush1.msra.mxu0 0.0
    %890 = vmatprep.subr.mxu0 0.0
    %891 = vmatpush1.msra.mxu0 0.0
    %892 = vmatprep.subr.mxu0 0.0
    %893 = vmatpush1.msra.mxu0 0.0
    %894 = vmatprep.subr.mxu0 0.0
    %895 = vmatpush1.msra.mxu0 0.0
    %896 = vmatprep.subr.mxu0 0.0
    %897 = vmatpush1.msra.mxu0 0.0
    %898 = vmatprep.subr.mxu0 %v873
    %899 = vmatpush1.msra.mxu0 %v872
    %900 = vmatprep.subr.mxu0 %v871
    %901 = vmatpush1.msra.mxu0 %v870
    %902 = vmatprep.subr.mxu0 %v869
    %903 = vmatpush1.msra.mxu0 %v868
    %904 = vmatprep.subr.mxu0 %v867
    %905 = vmatpush1.msra.mxu0 %v866
    %906 = vmatprep.subr.mxu0 0.0
    %907 = vmatpush2.msra.mxu0 0.0
    %908 = vmatprep.subr.mxu0 0.0
    %909 = vmatpush2.msra.mxu0 0.0
    %910 = vmatprep.subr.mxu0 0.0
    %911 = vmatpush2.msra.mxu0 0.0
    %912 = vmatprep.subr.mxu0 0.0
    %913 = vmatpush2.msra.mxu0 0.0
    %914 = vmatprep.subr.mxu0 0.0
    %915 = vmatpush2.msra.mxu0 0.0
    %916 = vmatprep.subr.mxu0 0.0
    %917 = vmatpush2.msra.mxu0 0.0
    %918 = vmatprep.subr.mxu0 0.0
    %919 = vmatpush2.msra.mxu0 0.0
    %920 = vmatprep.subr.mxu0 0.0
    %921 = vmatpush2.msra.mxu0 0.0
    %922 = vmatprep.subr.mxu0 0.0
    %923 = vmatpush2.msra.mxu0 0.0
    %924 = vmatprep.subr.mxu0 0.0
    %925 = vmatpush2.msra.mxu0 0.0
    %926 = vmatprep.subr.mxu0 0.0
    %927 = vmatpush2.msra.mxu0 0.0
    %928 = vmatprep.subr.mxu0 0.0
    %929 = vmatpush2.msra.mxu0 0.0
    %930 = vmatprep.subr.mxu0 0.0
    %931 = vmatpush2.msra.mxu0 0.0
    %932 = vmatprep.subr.mxu0 0.0
    %933 = vmatpush2.msra.mxu0 0.0
    %934 = vmatprep.subr.mxu0 0.0
    %935 = vmatpush2.msra.mxu0 0.0
    %936 = vmatprep.subr.mxu0 0.0
    %937 = vmatpush2.msra.mxu0 0.0
    %938 = vmatprep.mubr.f32.mxu0 0.0
    %939 = vmatmul.mubr.f32.gmra.mxu0 %v330
    %v940 = vpop.f32.mrf.mxu0
    %v941 = vadd.f32 %v106, %v940
    %v942 = vpop.f32.mrf.mxu0
    %v943 = vadd.f32 %v106, %v942
    %944 = vdwg.mxu0
    %v945 = vstv %s679
    %v946 = vmul.f32 %v945, %v941
    %v947 = vmul.f32 %v945, %v943
    %v948 = vadd.f32 %v677, %v946
    %v949 = vadd.f32 %v678, %v947
    %s950 = sld [smem:[#allocation2 + $0x3]]
    %951 = vmatprep.subr.mxu0 0.0
    %952 = vmatpush1.msra.mxu0 0.0
    %953 = vmatprep.subr.mxu0 0.0
    %954 = vmatpush1.msra.mxu0 0.0
    %955 = vmatprep.subr.mxu0 0.0
    %956 = vmatpush1.msra.mxu0 0.0
    %957 = vmatprep.subr.mxu0 0.0
    %958 = vmatpush1.msra.mxu0 0.0
    %959 = vmatprep.subr.mxu0 0.0
    %960 = vmatpush1.msra.mxu0 0.0
    %961 = vmatprep.subr.mxu0 0.0
    %962 = vmatpush1.msra.mxu0 0.0
    %963 = vmatprep.subr.mxu0 0.0
    %964 = vmatpush1.msra.mxu0 0.0
    %965 = vmatprep.subr.mxu0 0.0
    %966 = vmatpush1.msra.mxu0 0.0
    %967 = vmatprep.subr.mxu0 0.0
    %968 = vmatpush1.msra.mxu0 0.0
    %969 = vmatprep.subr.mxu0 0.0
    %970 = vmatpush1.msra.mxu0 0.0
    %971 = vmatprep.subr.mxu0 0.0
    %972 = vmatpush1.msra.mxu0 0.0
    %973 = vmatprep.subr.mxu0 0.0
    %974 = vmatpush1.msra.mxu0 0.0
    %975 = vmatprep.subr.mxu0 0.0
    %976 = vmatpush1.msra.mxu0 0.0
    %977 = vmatprep.subr.mxu0 0.0
    %978 = vmatpush1.msra.mxu0 0.0
    %979 = vmatprep.subr.mxu0 0.0
    %980 = vmatpush1.msra.mxu0 0.0
    %981 = vmatprep.subr.mxu0 %v949
    %982 = vmatpush1.msra.mxu0 %v948
    %983 = vmatprep.subr.mxu0 0.0
    %984 = vmatpush2.msra.mxu0 0.0
    %985 = vmatprep.subr.mxu0 0.0
    %986 = vmatpush2.msra.mxu0 0.0
    %987 = vmatprep.subr.mxu0 0.0
    %988 = vmatpush2.msra.mxu0 0.0
    %989 = vmatprep.subr.mxu0 0.0
    %990 = vmatpush2.msra.mxu0 0.0
    %991 = vmatprep.subr.mxu0 0.0
    %992 = vmatpush2.msra.mxu0 0.0
    %993 = vmatprep.subr.mxu0 0.0
    %994 = vmatpush2.msra.mxu0 0.0
    %995 = vmatprep.subr.mxu0 0.0
    %996 = vmatpush2.msra.mxu0 0.0
    %997 = vmatprep.subr.mxu0 0.0
    %998 = vmatpush2.msra.mxu0 0.0
    %999 = vmatprep.subr.mxu0 0.0
    %1000 = vmatpush2.msra.mxu0 0.0
    %1001 = vmatprep.subr.mxu0 0.0
    %1002 = vmatpush2.msra.mxu0 0.0
    %1003 = vmatprep.subr.mxu0 0.0
    %1004 = vmatpush2.msra.mxu0 0.0
    %1005 = vmatprep.subr.mxu0 0.0
    %1006 = vmatpush2.msra.mxu0 0.0
    %1007 = vmatprep.subr.mxu0 0.0
    %1008 = vmatpush2.msra.mxu0 0.0
    %1009 = vmatprep.subr.mxu0 0.0
    %1010 = vmatpush2.msra.mxu0 0.0
    %1011 = vmatprep.subr.mxu0 0.0
    %1012 = vmatpush2.msra.mxu0 0.0
    %1013 = vmatprep.subr.mxu0 0.0
    %1014 = vmatpush2.msra.mxu0 0.0
    %1015 = vmatprep.mubr.f32.mxu0 0.0
    %1016 = vmatmul.mubr.f32.gmra.mxu0 %v111
    %v1017 = vpop.f32.mrf.mxu0
    %v1018 = vadd.f32 %v61, %v1017
    %v1019 = vpop.f32.mrf.mxu0
    %v1020 = vadd.f32 %v61, %v1019
    %1021 = vmatprep.mubr.f32.mxu0 0.0
    %1022 = vmatmul.mubr.f32.gmra.mxu0 %v114
    %v1023 = vpop.f32.mrf.mxu0
    %v1024 = vadd.f32 %v66, %v1023
    %v1025 = vpop.f32.mrf.mxu0
    %v1026 = vadd.f32 %v66, %v1025
    %1027 = vmatprep.mubr.f32.mxu0 0.0
    %1028 = vmatmul.mubr.f32.gmra.mxu0 %v117
    %v1029 = vpop.f32.mrf.mxu0
    %v1030 = vadd.f32 %v71, %v1029
    %v1031 = vpop.f32.mrf.mxu0
    %v1032 = vadd.f32 %v71, %v1031
    %1033 = vmatprep.mubr.f32.mxu0 0.0
    %1034 = vmatmul.mubr.f32.gmra.mxu0 %v120
    %v1035 = vpop.f32.mrf.mxu0
    %v1036 = vadd.f32 %v76, %v1035
    %v1037 = vpop.f32.mrf.mxu0
    %v1038 = vadd.f32 %v76, %v1037
    %1039 = vdwg.mxu0
    %v1040 = vtanh.pop %v1018
    %v1041 = vtanh.pop %v1020
    %v1042 = vtanh.pop %v1024
    %v1043 = vtanh.pop %v1026
    %v1044 = vtanh.pop %v1030
    %v1045 = vtanh.pop %v1032
    %v1046 = vtanh.pop %v1036
    %v1047 = vtanh.pop %v1038
    %1048 = vmatprep.subr.mxu0 0.0
    %1049 = vmatpush1.msra.mxu0 0.0
    %1050 = vmatprep.subr.mxu0 0.0
    %1051 = vmatpush1.msra.mxu0 0.0
    %1052 = vmatprep.subr.mxu0 0.0
    %1053 = vmatpush1.msra.mxu0 0.0
    %1054 = vmatprep.subr.mxu0 0.0
    %1055 = vmatpush1.msra.mxu0 0.0
    %1056 = vmatprep.subr.mxu0 0.0
    %1057 = vmatpush1.msra.mxu0 0.0
    %1058 = vmatprep.subr.mxu0 0.0
    %1059 = vmatpush1.msra.mxu0 0.0
    %1060 = vmatprep.subr.mxu0 0.0
    %1061 = vmatpush1.msra.mxu0 0.0
    %1062 = vmatprep.subr.mxu0 0.0
    %1063 = vmatpush1.msra.mxu0 0.0
    %1064 = vmatprep.subr.mxu0 0.0
    %1065 = vmatpush1.msra.mxu0 0.0
    %1066 = vmatprep.subr.mxu0 0.0
    %1067 = vmatpush1.msra.mxu0 0.0
    %1068 = vmatprep.subr.mxu0 0.0
    %1069 = vmatpush1.msra.mxu0 0.0
    %1070 = vmatprep.subr.mxu0 0.0
    %1071 = vmatpush1.msra.mxu0 0.0
    %1072 = vmatprep.subr.mxu0 %v1047
    %1073 = vmatpush1.msra.mxu0 %v1046
    %1074 = vmatprep.subr.mxu0 %v1045
    %1075 = vmatpush1.msra.mxu0 %v1044
    %1076 = vmatprep.subr.mxu0 %v1043
    %1077 = vmatpush1.msra.mxu0 %v1042
    %1078 = vmatprep.subr.mxu0 %v1041
    %1079 = vmatpush1.msra.mxu0 %v1040
    %1080 = vmatprep.subr.mxu0 0.0
    %1081 = vmatpush2.msra.mxu0 0.0
    %1082 = vmatprep.subr.mxu0 0.0
    %1083 = vmatpush2.msra.mxu0 0.0
    %1084 = vmatprep.subr.mxu0 0.0
    %1085 = vmatpush2.msra.mxu0 0.0
    %1086 = vmatprep.subr.mxu0 0.0
    %1087 = vmatpush2.msra.mxu0 0.0
    %1088 = vmatprep.subr.mxu0 0.0
    %1089 = vmatpush2.msra.mxu0 0.0
    %1090 = vmatprep.subr.mxu0 0.0
    %1091 = vmatpush2.msra.mxu0 0.0
    %1092 = vmatprep.subr.mxu0 0.0
    %1093 = vmatpush2.msra.mxu0 0.0
    %1094 = vmatprep.subr.mxu0 0.0
    %1095 = vmatpush2.msra.mxu0 0.0
    %1096 = vmatprep.subr.mxu0 0.0
    %1097 = vmatpush2.msra.mxu0 0.0
    %1098 = vmatprep.subr.mxu0 0.0
    %1099 = vmatpush2.msra.mxu0 0.0
    %1100 = vmatprep.subr.mxu0 0.0
    %1101 = vmatpush2.msra.mxu0 0.0
    %1102 = vmatprep.subr.mxu0 0.0
    %1103 = vmatpush2.msra.mxu0 0.0
    %1104 = vmatprep.subr.mxu0 0.0
    %1105 = vmatpush2.msra.mxu0 0.0
    %1106 = vmatprep.subr.mxu0 0.0
    %1107 = vmatpush2.msra.mxu0 0.0
    %1108 = vmatprep.subr.mxu0 0.0
    %1109 = vmatpush2.msra.mxu0 0.0
    %1110 = vmatprep.subr.mxu0 0.0
    %1111 = vmatpush2.msra.mxu0 0.0
    %1112 = vmatprep.mubr.f32.mxu0 0.0
    %1113 = vmatmul.mubr.f32.gmra.mxu0 %v221
    %v1114 = vpop.f32.mrf.mxu0
    %v1115 = vadd.f32 %v85, %v1114
    %v1116 = vpop.f32.mrf.mxu0
    %v1117 = vadd.f32 %v85, %v1116
    %1118 = vmatprep.mubr.f32.mxu0 0.0
    %1119 = vmatmul.mubr.f32.gmra.mxu0 %v224
    %v1120 = vpop.f32.mrf.mxu0
    %v1121 = vadd.f32 %v90, %v1120
    %v1122 = vpop.f32.mrf.mxu0
    %v1123 = vadd.f32 %v90, %v1122
    %1124 = vmatprep.mubr.f32.mxu0 0.0
    %1125 = vmatmul.mubr.f32.gmra.mxu0 %v227
    %v1126 = vpop.f32.mrf.mxu0
    %v1127 = vadd.f32 %v95, %v1126
    %v1128 = vpop.f32.mrf.mxu0
    %v1129 = vadd.f32 %v95, %v1128
    %1130 = vmatprep.mubr.f32.mxu0 0.0
    %1131 = vmatmul.mubr.f32.gmra.mxu0 %v230
    %v1132 = vpop.f32.mrf.mxu0
    %v1133 = vadd.f32 %v100, %v1132
    %v1134 = vpop.f32.mrf.mxu0
    %v1135 = vadd.f32 %v100, %v1134
    %1136 = vdwg.mxu0
    %v1137 = vtanh.pop %v1115
    %v1138 = vtanh.pop %v1117
    %v1139 = vtanh.pop %v1121
    %v1140 = vtanh.pop %v1123
    %v1141 = vtanh.pop %v1127
    %v1142 = vtanh.pop %v1129
    %v1143 = vtanh.pop %v1133
    %v1144 = vtanh.pop %v1135
    %1145 = vmatprep.subr.mxu0 0.0
    %1146 = vmatpush1.msra.mxu0 0.0
    %1147 = vmatprep.subr.mxu0 0.0
    %1148 = vmatpush1.msra.mxu0 0.0
    %1149 = vmatprep.subr.mxu0 0.0
    %1150 = vmatpush1.msra.mxu0 0.0
    %1151 = vmatprep.subr.mxu0 0.0
    %1152 = vmatpush1.msra.mxu0 0.0
    %1153 = vmatprep.subr.mxu0 0.0
    %1154 = vmatpush1.msra.mxu0 0.0
    %1155 = vmatprep.subr.mxu0 0.0
    %1156 = vmatpush1.msra.mxu0 0.0
    %1157 = vmatprep.subr.mxu0 0.0
    %1158 = vmatpush1.msra.mxu0 0.0
    %1159 = vmatprep.subr.mxu0 0.0
    %1160 = vmatpush1.msra.mxu0 0.0
    %1161 = vmatprep.subr.mxu0 0.0
    %1162 = vmatpush1.msra.mxu0 0.0
    %1163 = vmatprep.subr.mxu0 0.0
    %1164 = vmatpush1.msra.mxu0 0.0
    %1165 = vmatprep.subr.mxu0 0.0
    %1166 = vmatpush1.msra.mxu0 0.0
    %1167 = vmatprep.subr.mxu0 0.0
    %1168 = vmatpush1.msra.mxu0 0.0
    %1169 = vmatprep.subr.mxu0 %v1144
    %1170 = vmatpush1.msra.mxu0 %v1143
    %1171 = vmatprep.subr.mxu0 %v1142
    %1172 = vmatpush1.msra.mxu0 %v1141
    %1173 = vmatprep.subr.mxu0 %v1140
    %1174 = vmatpush1.msra.mxu0 %v1139
    %1175 = vmatprep.subr.mxu0 %v1138
    %1176 = vmatpush1.msra.mxu0 %v1137
    %1177 = vmatprep.subr.mxu0 0.0
    %1178 = vmatpush2.msra.mxu0 0.0
    %1179 = vmatprep.subr.mxu0 0.0
    %1180 = vmatpush2.msra.mxu0 0.0
    %1181 = vmatprep.subr.mxu0 0.0
    %1182 = vmatpush2.msra.mxu0 0.0
    %1183 = vmatprep.subr.mxu0 0.0
    %1184 = vmatpush2.msra.mxu0 0.0
    %1185 = vmatprep.subr.mxu0 0.0
    %1186 = vmatpush2.msra.mxu0 0.0
    %1187 = vmatprep.subr.mxu0 0.0
    %1188 = vmatpush2.msra.mxu0 0.0
    %1189 = vmatprep.subr.mxu0 0.0
    %1190 = vmatpush2.msra.mxu0 0.0
    %1191 = vmatprep.subr.mxu0 0.0
    %1192 = vmatpush2.msra.mxu0 0.0
    %1193 = vmatprep.subr.mxu0 0.0
    %1194 = vmatpush2.msra.mxu0 0.0
    %1195 = vmatprep.subr.mxu0 0.0
    %1196 = vmatpush2.msra.mxu0 0.0
    %1197 = vmatprep.subr.mxu0 0.0
    %1198 = vmatpush2.msra.mxu0 0.0
    %1199 = vmatprep.subr.mxu0 0.0
    %1200 = vmatpush2.msra.mxu0 0.0
    %1201 = vmatprep.subr.mxu0 0.0
    %1202 = vmatpush2.msra.mxu0 0.0
    %1203 = vmatprep.subr.mxu0 0.0
    %1204 = vmatpush2.msra.mxu0 0.0
    %1205 = vmatprep.subr.mxu0 0.0
    %1206 = vmatpush2.msra.mxu0 0.0
    %1207 = vmatprep.subr.mxu0 0.0
    %1208 = vmatpush2.msra.mxu0 0.0
    %1209 = vmatprep.mubr.f32.mxu0 0.0
    %1210 = vmatmul.mubr.f32.gmra.mxu0 %v330
    %v1211 = vpop.f32.mrf.mxu0
    %v1212 = vadd.f32 %v106, %v1211
    %v1213 = vpop.f32.mrf.mxu0
    %v1214 = vadd.f32 %v106, %v1213
    %1215 = vdwg.mxu0
    %v1216 = vstv %s950
    %v1217 = vmul.f32 %v1216, %v1212
    %v1218 = vmul.f32 %v1216, %v1214
    %v1219 = vadd.f32 %v948, %v1217
    %v1220 = vadd.f32 %v949, %v1218
    %1221 = vst [vmem:[#allocation5] sm:$0xff] %v1219
    %1222 = vst [vmem:[#allocation5 + $0x8] sm:$0xff] %v1220
    // Predicated region
    $region38: #{tpu_custom_call.1} parent=1 // pred_check
      _
    $region39: #{tpu_custom_call.1} parent=1 // pred_check_branch
      %1224 = sbr.rel (0) target = $region41
    $region40: #{tpu_custom_call.1} parent=1 // pred_region
      %s1226 = ssub.s32 256, 256
      %1227 = vsyncadd [#allocation3], %s1226
      %s1229 = sshll.u32 [#allocation5], 4
      %s1230 = int_to_ptr.vmem [resolvable:$true] %s1229
      %1232 = dma.vmem_to_hbm [thread:$0]  %s1230, 256, %s8, [#allocation3]
    $region41: #{tpu_custom_call.1} parent=1 // pred_fallthru
      _
    // Predicated region
    $region42: #{tpu_custom_call.1} parent=1 // pred_check
      _
    $region43: #{tpu_custom_call.1} parent=1 // pred_check_branch
      %1234 = sbr.rel (0) target = $region45
    $region44: #{tpu_custom_call.1} parent=1 // pred_region
      %1235 = dma.done [#allocation3], 256
    $region45: #{tpu_custom_call.1} parent=1 // pred_fallthru
      _
    %1236 = vsyncpa [#allocation3], 1
    %1237 = vsyncpa [#allocation4], 1

</llo_original>
